<compile_context>
chip_gen: v7x
topology: tpu7x:2x2x1
jax: 0.10.0
libtpu: 0.0.40
codegen_flags: <defaults>
</compile_context>

<pallas_src>
import functools

import jax
import jax.numpy as jnp
import numpy as np
from jax.experimental import pallas as pl
from jax.experimental.pallas import tpu as pltpu


def _concat_pool_kernel(x_hbm, o_ref, sem, *, n_layers, total_layers, hidden):
    # x_hbm : (L, B, S, H) raw HBM ref (memory_space=pl.ANY, no auto-DMA)
    # o_ref : (B, n_layers*H) resident VMEM output block
    # sem   : (n_layers,) DMA semaphores, one per layer copy
    copies = []
    for i in range(n_layers):
        # CLS row (seq position 0) of layer L-1-i: a (B, H) strided rectangle.
        src = x_hbm.at[total_layers - 1 - i, :, 0, :]
        # Column block i of the output: lane-dense for H % 128 == 0.
        dst = o_ref.at[:, i * hidden:(i + 1) * hidden]
        cp = pltpu.make_async_copy(src, dst, sem.at[i])
        cp.start()                      # issue all DMAs up front
        copies.append(cp)
    for cp in copies:                   # then wait on all of them
        cp.wait()


def concat_pooling(all_hidden_states, n_layers):
    """all_hidden_states: (L, B, S, H) -> (B, n_layers * H)."""
    L, B, S, H = all_hidden_states.shape
    assert n_layers <= L
    dtype = all_hidden_states.dtype
    itemsize = jnp.dtype(dtype).itemsize

    # Exact-row gather: reads + writes are both n_layers*B*H elements.
    cost = pl.CostEstimate(
        flops=0,
        transcendentals=0,
        bytes_accessed=2 * n_layers * B * H * itemsize,
    )

    kernel = functools.partial(
        _concat_pool_kernel, n_layers=n_layers, total_layers=L, hidden=H
    )

    return pl.pallas_call(
        kernel,
        out_shape=jax.ShapeDtypeStruct((B, n_layers * H), dtype),
        # Leave the stacked hidden states in HBM; we gather CLS rows manually.
        in_specs=[pl.BlockSpec(memory_space=pl.ANY)],
        # Whole output lives in VMEM for the single invocation, flushed once.
        out_specs=pl.BlockSpec(memory_space=pltpu.MemorySpace.VMEM),
        scratch_shapes=[pltpu.SemaphoreType.DMA((n_layers,))],
        cost_estimate=cost,
    )(all_hidden_states)


def concat_pooling_ref(all_hidden_states, n_layers):
    pooled = jnp.concatenate(
        [all_hidden_states[-(i + 1)] for i in range(n_layers)], axis=-1
    )
    return pooled[:, 0]


if __name__ == "__main__":
    # Small synthetic "backbone outputs": L layers of (B, S, H) hidden states.
    # H kept a multiple of 128 so output DMAs land on lane-aligned columns
    # (as they do for real transformer hidden sizes).
    L = 6          # total hidden-state layers produced by the backbone
    N_LAYERS = 4   # pooling_cfg.n_layers
    B, S, H = 2, 8, 128

    key = jax.random.PRNGKey(0)
    layer_keys = jax.random.split(key, L)
    # backbone_outputs[1] analogue: a tuple of per-layer hidden states.
    hidden_states = tuple(
        jax.random.normal(k, (B, S, H), dtype=jnp.float32) for k in layer_keys
    )

    # get_all_hidden_states: stack -> (L, B, S, H)   (glue, plain JAX)
    all_hidden_states = jnp.stack(hidden_states)

    out = concat_pooling(all_hidden_states, N_LAYERS)
    out = jax.block_until_ready(out)

    ref = concat_pooling_ref(all_hidden_states, N_LAYERS)
    np.testing.assert_allclose(np.asarray(out), np.asarray(ref), rtol=0, atol=0)
    assert out.shape == (B, N_LAYERS * H)

    print("KERNEL_OK")
</pallas_src>

<mosaic_0001>
module attributes {stable_mosaic.version = 11 : i64} {
  func.func @_concat_pool_kernel(%arg0: memref<6x2x8x128xf32, #tpu.memory_space<any>>, %arg1: memref<2x512xf32, #tpu.memory_space<vmem>>, %arg2: memref<4x!tpu.dma_semaphore, #tpu.memory_space<semaphore_mem>>) attributes {dimension_semantics = [], scalar_prefetch = 0 : i64, scratch_operands = 1 : i64, tpu.core_type = #tpu.core_type<tc>} {
    %c5_i32 = arith.constant 5 : i32
    %c0_i32 = arith.constant 0 : i32
    %c0_i32_0 = arith.constant 0 : i32
    %c0_i32_1 = arith.constant 0 : i32
    %c0_i32_2 = arith.constant 0 : i32
    %0 = tpu.memref_slice %arg0[%c5_i32, %c0_i32_1, %c0_i32, %c0_i32_2] : memref<6x2x8x128xf32, #tpu.memory_space<any>> -> memref<1x2x1x128xf32, #tpu.memory_space<any>>
    %1 = tpu.memref_squeeze %0 : memref<1x2x1x128xf32, #tpu.memory_space<any>> -> memref<2x128xf32, #tpu.memory_space<any>>
    %c0_i32_3 = arith.constant 0 : i32
    %c0_i32_4 = arith.constant 0 : i32
    %2 = tpu.memref_slice %arg1[%c0_i32_3, %c0_i32_4] : memref<2x512xf32, #tpu.memory_space<vmem>> -> memref<2x128xf32, #tpu.memory_space<vmem>>
    %3 = tpu.memref_slice %arg2[%c0_i32_0] : memref<4x!tpu.dma_semaphore, #tpu.memory_space<semaphore_mem>> -> memref<1x!tpu.dma_semaphore, #tpu.memory_space<semaphore_mem>>
    %4 = tpu.memref_squeeze %3 : memref<1x!tpu.dma_semaphore, #tpu.memory_space<semaphore_mem>> -> memref<!tpu.dma_semaphore, #tpu.memory_space<semaphore_mem>>
    tpu.enqueue_dma source(%1 : memref<2x128xf32, #tpu.memory_space<any>>) target(%2 : memref<2x128xf32, #tpu.memory_space<vmem>>) target_semaphore(%4 : memref<!tpu.dma_semaphore, #tpu.memory_space<semaphore_mem>>)
    %c4_i32 = arith.constant 4 : i32
    %c0_i32_5 = arith.constant 0 : i32
    %c1_i32 = arith.constant 1 : i32
    %c0_i32_6 = arith.constant 0 : i32
    %c0_i32_7 = arith.constant 0 : i32
    %5 = tpu.memref_slice %arg0[%c4_i32, %c0_i32_6, %c0_i32_5, %c0_i32_7] : memref<6x2x8x128xf32, #tpu.memory_space<any>> -> memref<1x2x1x128xf32, #tpu.memory_space<any>>
    %6 = tpu.memref_squeeze %5 : memref<1x2x1x128xf32, #tpu.memory_space<any>> -> memref<2x128xf32, #tpu.memory_space<any>>
    %c0_i32_8 = arith.constant 0 : i32
    %c128_i32 = arith.constant 128 : i32
    %7 = tpu.memref_slice %arg1[%c0_i32_8, %c128_i32] : memref<2x512xf32, #tpu.memory_space<vmem>> -> memref<2x128xf32, #tpu.memory_space<vmem>>
    %8 = tpu.memref_slice %arg2[%c1_i32] : memref<4x!tpu.dma_semaphore, #tpu.memory_space<semaphore_mem>> -> memref<1x!tpu.dma_semaphore, #tpu.memory_space<semaphore_mem>>
    %9 = tpu.memref_squeeze %8 : memref<1x!tpu.dma_semaphore, #tpu.memory_space<semaphore_mem>> -> memref<!tpu.dma_semaphore, #tpu.memory_space<semaphore_mem>>
    tpu.enqueue_dma source(%6 : memref<2x128xf32, #tpu.memory_space<any>>) target(%7 : memref<2x128xf32, #tpu.memory_space<vmem>>) target_semaphore(%9 : memref<!tpu.dma_semaphore, #tpu.memory_space<semaphore_mem>>)
    %c3_i32 = arith.constant 3 : i32
    %c0_i32_9 = arith.constant 0 : i32
    %c2_i32 = arith.constant 2 : i32
    %c0_i32_10 = arith.constant 0 : i32
    %c0_i32_11 = arith.constant 0 : i32
    %10 = tpu.memref_slice %arg0[%c3_i32, %c0_i32_10, %c0_i32_9, %c0_i32_11] : memref<6x2x8x128xf32, #tpu.memory_space<any>> -> memref<1x2x1x128xf32, #tpu.memory_space<any>>
    %11 = tpu.memref_squeeze %10 : memref<1x2x1x128xf32, #tpu.memory_space<any>> -> memref<2x128xf32, #tpu.memory_space<any>>
    %c0_i32_12 = arith.constant 0 : i32
    %c256_i32 = arith.constant 256 : i32
    %12 = tpu.memref_slice %arg1[%c0_i32_12, %c256_i32] : memref<2x512xf32, #tpu.memory_space<vmem>> -> memref<2x128xf32, #tpu.memory_space<vmem>>
    %13 = tpu.memref_slice %arg2[%c2_i32] : memref<4x!tpu.dma_semaphore, #tpu.memory_space<semaphore_mem>> -> memref<1x!tpu.dma_semaphore, #tpu.memory_space<semaphore_mem>>
    %14 = tpu.memref_squeeze %13 : memref<1x!tpu.dma_semaphore, #tpu.memory_space<semaphore_mem>> -> memref<!tpu.dma_semaphore, #tpu.memory_space<semaphore_mem>>
    tpu.enqueue_dma source(%11 : memref<2x128xf32, #tpu.memory_space<any>>) target(%12 : memref<2x128xf32, #tpu.memory_space<vmem>>) target_semaphore(%14 : memref<!tpu.dma_semaphore, #tpu.memory_space<semaphore_mem>>)
    %c2_i32_13 = arith.constant 2 : i32
    %c0_i32_14 = arith.constant 0 : i32
    %c3_i32_15 = arith.constant 3 : i32
    %c0_i32_16 = arith.constant 0 : i32
    %c0_i32_17 = arith.constant 0 : i32
    %15 = tpu.memref_slice %arg0[%c2_i32_13, %c0_i32_16, %c0_i32_14, %c0_i32_17] : memref<6x2x8x128xf32, #tpu.memory_space<any>> -> memref<1x2x1x128xf32, #tpu.memory_space<any>>
    %16 = tpu.memref_squeeze %15 : memref<1x2x1x128xf32, #tpu.memory_space<any>> -> memref<2x128xf32, #tpu.memory_space<any>>
    %c0_i32_18 = arith.constant 0 : i32
    %c384_i32 = arith.constant 384 : i32
    %17 = tpu.memref_slice %arg1[%c0_i32_18, %c384_i32] : memref<2x512xf32, #tpu.memory_space<vmem>> -> memref<2x128xf32, #tpu.memory_space<vmem>>
    %18 = tpu.memref_slice %arg2[%c3_i32_15] : memref<4x!tpu.dma_semaphore, #tpu.memory_space<semaphore_mem>> -> memref<1x!tpu.dma_semaphore, #tpu.memory_space<semaphore_mem>>
    %19 = tpu.memref_squeeze %18 : memref<1x!tpu.dma_semaphore, #tpu.memory_space<semaphore_mem>> -> memref<!tpu.dma_semaphore, #tpu.memory_space<semaphore_mem>>
    tpu.enqueue_dma source(%16 : memref<2x128xf32, #tpu.memory_space<any>>) target(%17 : memref<2x128xf32, #tpu.memory_space<vmem>>) target_semaphore(%19 : memref<!tpu.dma_semaphore, #tpu.memory_space<semaphore_mem>>)
    %c5_i32_19 = arith.constant 5 : i32
    %c0_i32_20 = arith.constant 0 : i32
    %c0_i32_21 = arith.constant 0 : i32
    %c0_i32_22 = arith.constant 0 : i32
    %c0_i32_23 = arith.constant 0 : i32
    %20 = tpu.memref_slice %arg0[%c5_i32_19, %c0_i32_22, %c0_i32_20, %c0_i32_23] : memref<6x2x8x128xf32, #tpu.memory_space<any>> -> memref<1x2x1x128xf32, #tpu.memory_space<any>>
    %21 = tpu.memref_squeeze %20 : memref<1x2x1x128xf32, #tpu.memory_space<any>> -> memref<2x128xf32, #tpu.memory_space<any>>
    %c0_i32_24 = arith.constant 0 : i32
    %c0_i32_25 = arith.constant 0 : i32
    %22 = tpu.memref_slice %arg1[%c0_i32_24, %c0_i32_25] : memref<2x512xf32, #tpu.memory_space<vmem>> -> memref<2x128xf32, #tpu.memory_space<vmem>>
    %23 = tpu.memref_slice %arg2[%c0_i32_21] : memref<4x!tpu.dma_semaphore, #tpu.memory_space<semaphore_mem>> -> memref<1x!tpu.dma_semaphore, #tpu.memory_space<semaphore_mem>>
    %24 = tpu.memref_squeeze %23 : memref<1x!tpu.dma_semaphore, #tpu.memory_space<semaphore_mem>> -> memref<!tpu.dma_semaphore, #tpu.memory_space<semaphore_mem>>
    tpu.wait_dma2 semaphore(%24 : memref<!tpu.dma_semaphore, #tpu.memory_space<semaphore_mem>>) src(%21 : memref<2x128xf32, #tpu.memory_space<any>>) dst(%22 : memref<2x128xf32, #tpu.memory_space<vmem>>)
    %c4_i32_26 = arith.constant 4 : i32
    %c0_i32_27 = arith.constant 0 : i32
    %c1_i32_28 = arith.constant 1 : i32
    %c0_i32_29 = arith.constant 0 : i32
    %c0_i32_30 = arith.constant 0 : i32
    %25 = tpu.memref_slice %arg0[%c4_i32_26, %c0_i32_29, %c0_i32_27, %c0_i32_30] : memref<6x2x8x128xf32, #tpu.memory_space<any>> -> memref<1x2x1x128xf32, #tpu.memory_space<any>>
    %26 = tpu.memref_squeeze %25 : memref<1x2x1x128xf32, #tpu.memory_space<any>> -> memref<2x128xf32, #tpu.memory_space<any>>
    %c0_i32_31 = arith.constant 0 : i32
    %c128_i32_32 = arith.constant 128 : i32
    %27 = tpu.memref_slice %arg1[%c0_i32_31, %c128_i32_32] : memref<2x512xf32, #tpu.memory_space<vmem>> -> memref<2x128xf32, #tpu.memory_space<vmem>>
    %28 = tpu.memref_slice %arg2[%c1_i32_28] : memref<4x!tpu.dma_semaphore, #tpu.memory_space<semaphore_mem>> -> memref<1x!tpu.dma_semaphore, #tpu.memory_space<semaphore_mem>>
    %29 = tpu.memref_squeeze %28 : memref<1x!tpu.dma_semaphore, #tpu.memory_space<semaphore_mem>> -> memref<!tpu.dma_semaphore, #tpu.memory_space<semaphore_mem>>
    tpu.wait_dma2 semaphore(%29 : memref<!tpu.dma_semaphore, #tpu.memory_space<semaphore_mem>>) src(%26 : memref<2x128xf32, #tpu.memory_space<any>>) dst(%27 : memref<2x128xf32, #tpu.memory_space<vmem>>)
    %c3_i32_33 = arith.constant 3 : i32
    %c0_i32_34 = arith.constant 0 : i32
    %c2_i32_35 = arith.constant 2 : i32
    %c0_i32_36 = arith.constant 0 : i32
    %c0_i32_37 = arith.constant 0 : i32
    %30 = tpu.memref_slice %arg0[%c3_i32_33, %c0_i32_36, %c0_i32_34, %c0_i32_37] : memref<6x2x8x128xf32, #tpu.memory_space<any>> -> memref<1x2x1x128xf32, #tpu.memory_space<any>>
    %31 = tpu.memref_squeeze %30 : memref<1x2x1x128xf32, #tpu.memory_space<any>> -> memref<2x128xf32, #tpu.memory_space<any>>
    %c0_i32_38 = arith.constant 0 : i32
    %c256_i32_39 = arith.constant 256 : i32
    %32 = tpu.memref_slice %arg1[%c0_i32_38, %c256_i32_39] : memref<2x512xf32, #tpu.memory_space<vmem>> -> memref<2x128xf32, #tpu.memory_space<vmem>>
    %33 = tpu.memref_slice %arg2[%c2_i32_35] : memref<4x!tpu.dma_semaphore, #tpu.memory_space<semaphore_mem>> -> memref<1x!tpu.dma_semaphore, #tpu.memory_space<semaphore_mem>>
    %34 = tpu.memref_squeeze %33 : memref<1x!tpu.dma_semaphore, #tpu.memory_space<semaphore_mem>> -> memref<!tpu.dma_semaphore, #tpu.memory_space<semaphore_mem>>
    tpu.wait_dma2 semaphore(%34 : memref<!tpu.dma_semaphore, #tpu.memory_space<semaphore_mem>>) src(%31 : memref<2x128xf32, #tpu.memory_space<any>>) dst(%32 : memref<2x128xf32, #tpu.memory_space<vmem>>)
    %c2_i32_40 = arith.constant 2 : i32
    %c0_i32_41 = arith.constant 0 : i32
    %c3_i32_42 = arith.constant 3 : i32
    %c0_i32_43 = arith.constant 0 : i32
    %c0_i32_44 = arith.constant 0 : i32
    %35 = tpu.memref_slice %arg0[%c2_i32_40, %c0_i32_43, %c0_i32_41, %c0_i32_44] : memref<6x2x8x128xf32, #tpu.memory_space<any>> -> memref<1x2x1x128xf32, #tpu.memory_space<any>>
    %36 = tpu.memref_squeeze %35 : memref<1x2x1x128xf32, #tpu.memory_space<any>> -> memref<2x128xf32, #tpu.memory_space<any>>
    %c0_i32_45 = arith.constant 0 : i32
    %c384_i32_46 = arith.constant 384 : i32
    %37 = tpu.memref_slice %arg1[%c0_i32_45, %c384_i32_46] : memref<2x512xf32, #tpu.memory_space<vmem>> -> memref<2x128xf32, #tpu.memory_space<vmem>>
    %38 = tpu.memref_slice %arg2[%c3_i32_42] : memref<4x!tpu.dma_semaphore, #tpu.memory_space<semaphore_mem>> -> memref<1x!tpu.dma_semaphore, #tpu.memory_space<semaphore_mem>>
    %39 = tpu.memref_squeeze %38 : memref<1x!tpu.dma_semaphore, #tpu.memory_space<semaphore_mem>> -> memref<!tpu.dma_semaphore, #tpu.memory_space<semaphore_mem>>
    tpu.wait_dma2 semaphore(%39 : memref<!tpu.dma_semaphore, #tpu.memory_space<semaphore_mem>>) src(%36 : memref<2x128xf32, #tpu.memory_space<any>>) dst(%37 : memref<2x128xf32, #tpu.memory_space<vmem>>)
    return
  }
}

</mosaic_0001>

<llo_original>
// kernel: tpu_custom_call.1
$region0: #{tpu_custom_call.1}
  #allocation0 [shape = 'u32[]', space=smem, size = 0x4, offset = 0x4, fixed_abs, tag = 'smem constant byte address 0x4 - core index']
  #allocation1 [shape = 'u32[144,128]{1,0:T(1,128)}', space=vmem, size = 0x12000, scoped, tag = 'internal scratch']
  #allocation2 [shape = 's32[4]{0}', space=sflag, size = 0x10, scoped, tag = 'scratch operand']
  #allocation5 [shape = 's32[]', space=sflag, size = 0x4, offset = 0, fixed_abs, tag = 'sflag constant byte address 0x0 - dummy sync flag']
  #allocation6 [shape = 's32[]', space=sflag, size = 0x4, offset = 0, fixed_abs, tag = 'sflag constant byte address 0x0 - dummy sync flag']
  #allocation7 [shape = 's32[]', space=sflag, size = 0x4, offset = 0, fixed_abs, tag = 'sflag constant byte address 0x0 - dummy sync flag']
  #allocation8 [shape = 's32[]', space=sflag, size = 0x4, offset = 0, fixed_abs, tag = 'sflag constant byte address 0x0 - dummy sync flag']
  %s0 = inlined_call_operand.hbm [shape: f32[6,2,8,128], index: 0, kind: input, shape index: {}]
  %s1 = inlined_call_operand.hbm [shape: f32[2,512], index: 1, kind: output, shape index: {}]
  %s2 = sld [smem:[#allocation0]]
  $region10: #{tpu_custom_call.1} parent=0
    _
  %s4 = ssub.s32 1, %s2
  %s5 = scalar_select 0, %s4, %s2
  $region1: #{tpu_custom_call.1} parent=0
    #allocation3 [shape = 'u8[4096]{0}', space=vmem, size = 0x1000, scoped, tag = 'output window, operand 0, single buffered']
    #allocation4 [shape = 's32[1]{0}', space=sflag, size = 0x4, scoped, tag = 'scoped memory for tpu_custom_call.1']
    %6 = vsyncpa [#allocation4], 0
    %s7 = scalar_lea.hbm %s0, 1280
    %s9 = sshll.u32 [#allocation3], 4
    %s10 = int_to_ptr.vmem [resolvable:$true] %s9
    %12 = dma.hbm_to_vmem [thread:$0]  %s7, 32, %s10, [#allocation2], 128, 16, 1
    %s13 = scalar_lea.hbm %s0, 1024
    %s14 = scalar_lea.vmem [#allocation3], 2
    %s15 = scalar_lea.sflag [#allocation2], 1
    %s17 = sshll.u32 %s14, 4
    %s18 = int_to_ptr.vmem [resolvable:$true] %s17
    %20 = dma.hbm_to_vmem [thread:$0]  %s13, 32, %s18, %s15, 128, 16, 1
    %s21 = scalar_lea.hbm %s0, 768
    %s22 = scalar_lea.vmem [#allocation3], 4
    %s23 = scalar_lea.sflag [#allocation2], 2
    %s25 = sshll.u32 %s22, 4
    %s26 = int_to_ptr.vmem [resolvable:$true] %s25
    %28 = dma.hbm_to_vmem [thread:$0]  %s21, 32, %s26, %s23, 128, 16, 1
    %s29 = scalar_lea.hbm %s0, 512
    %s30 = scalar_lea.vmem [#allocation3], 6
    %s31 = scalar_lea.sflag [#allocation2], 3
    %s33 = sshll.u32 %s30, 4
    %s34 = int_to_ptr.vmem [resolvable:$true] %s33
    %36 = dma.hbm_to_vmem [thread:$0]  %s29, 32, %s34, %s31, 128, 16, 1
    %s37 = smul.u32 2, 1
    %s38 = sshll.u32 %s37, 4
    %39 = dma.done [#allocation2], %s38
    %s40 = sshll.u32 %s37, 4
    %41 = dma.done %s15, %s40
    %s42 = sshll.u32 %s37, 4
    %43 = dma.done %s23, %s42
    %s44 = sshll.u32 %s37, 4
    %45 = dma.done %s31, %s44
    // Predicated region
    $region2: #{tpu_custom_call.1} parent=1 // pred_check
      _
    $region3: #{tpu_custom_call.1} parent=1 // pred_check_branch
      %47 = sbr.rel (0) target = $region5
    $region4: #{tpu_custom_call.1} parent=1 // pred_region
      %s49 = ssub.s32 128, 128
      %50 = vsyncadd [#allocation4], %s49
      %s52 = sshll.u32 [#allocation3], 4
      %s53 = int_to_ptr.vmem [resolvable:$true] %s52
      %55 = dma.vmem_to_hbm [thread:$0]  %s53, 128, %s1, [#allocation4]
    $region5: #{tpu_custom_call.1} parent=1 // pred_fallthru
      _
    // Predicated region
    $region6: #{tpu_custom_call.1} parent=1 // pred_check
      _
    $region7: #{tpu_custom_call.1} parent=1 // pred_check_branch
      %57 = sbr.rel (0) target = $region9
    $region8: #{tpu_custom_call.1} parent=1 // pred_region
      %58 = dma.done [#allocation4], 128
    $region9: #{tpu_custom_call.1} parent=1 // pred_fallthru
      _
    %59 = vsyncpa [#allocation4], 1
  %60 = vsyncmov [#allocation2]
  %s61 = vpop.sfrf %60
  %p62 = scmp.eq.s32.totalorder %s61, 0
  %p63 = pneg %p62
  %65 = shalt.err (%p63)
  %s66 = scalar_lea.sflag [#allocation2], 1
  %67 = vsyncmov %s66
  %s68 = vpop.sfrf %67
  %p69 = scmp.eq.s32.totalorder %s68, 0
  %p70 = pneg %p69
  %72 = shalt.err (%p70)
  %s73 = scalar_lea.sflag [#allocation2], 2
  %74 = vsyncmov %s73
  %s75 = vpop.sfrf %74
  %p76 = scmp.eq.s32.totalorder %s75, 0
  %p77 = pneg %p76
  %79 = shalt.err (%p77)
  %s80 = scalar_lea.sflag [#allocation2], 3
  %81 = vsyncmov %s80
  %s82 = vpop.sfrf %81
  %p83 = scmp.eq.s32.totalorder %s82, 0
  %p84 = pneg %p83
  %86 = shalt.err (%p84)

</llo_original>
